<compile_context>
chip_gen: v7x
topology: tpu7x:2x2x1
jax: 0.10.0
libtpu: 0.0.40
codegen_flags: <defaults>
</compile_context>

<pallas_src>
import jax
import jax.numpy as jnp
from jax.experimental import pallas as pl
from jax.experimental.pallas import tpu as pltpu


def _round_up(x, m):
    return ((x + m - 1) // m) * m


def _fast_sigmoid(x):
    # sigmoid(x) = 1 / (1 + exp(-x)); approx reciprocal keeps the divide on the EUP (vrcp).
    return pl.reciprocal(1.0 + jnp.exp(-x), approx=True)


def _critic_seq_kernel(x_ref, h0_ref,
                       w1_ref, b1_ref,
                       wih_ref, bih_ref,
                       whh_ref, bhh_ref,
                       w3_ref, b3_ref,
                       v_ref, hout_ref):
    t = pl.program_id(1)
    H = hout_ref.shape[-1]

    # Initialize the carried hidden state (resident output block) from h0 at t == 0.
    @pl.when(t == 0)
    def _():
        hout_ref[...] = h0_ref[...]

    h = hout_ref[...]                      # (Tb, H) f32 carried across the T axis
    x = x_ref[0]                           # (Tb, In) f32

    # fc1 + ReLU   (bf16 MXU operands, f32 accumulate / activation)
    y = jnp.dot(x.astype(jnp.bfloat16), w1_ref[...],
                preferred_element_type=jnp.float32) + b1_ref[...]
    y = jnp.maximum(y, 0.0)                # (Tb, H)

    # GRU gates: two (Tb,H)@(H,3H) dots, columns [r | z | n]; no concat, no zero blocks.
    gi = jnp.dot(y.astype(jnp.bfloat16), wih_ref[...],
                 preferred_element_type=jnp.float32) + bih_ref[...]
    gh = jnp.dot(h.astype(jnp.bfloat16), whh_ref[...],
                 preferred_element_type=jnp.float32) + bhh_ref[...]

    rz = _fast_sigmoid(gi[:, :2 * H] + gh[:, :2 * H])     # (Tb, 2H)
    r = rz[:, :H]
    z = rz[:, H:]
    n = jnp.tanh(gi[:, 2 * H:] + r * gh[:, 2 * H:])
    h_new = (1.0 - z) * n + z * h                          # (Tb, H) f32
    hout_ref[...] = h_new                                  # carried state + final output

    # fc3 as a lane reduction (VPU/XLU), avoids an N=1 MXU pass.
    v_ref[0] = jnp.sum(h_new * w3_ref[...], axis=-1, keepdims=True) + b3_ref[0, 0]


def _prepare_params(params):
    """Transpose / cast PyTorch-layout weights once, outside the kernel."""
    f32, bf16 = jnp.float32, jnp.bfloat16
    H = params["w_ih"].shape[1]
    w1t = params["w1"].T.astype(bf16)                    # (In, H)   MXU operand
    b1 = params["b1"].reshape(1, H).astype(f32)          # (1, H)
    wih_t = params["w_ih"].T.astype(bf16)                # (H, 3H)   cols [r | z | n]
    whh_t = params["w_hh"].T.astype(bf16)                # (H, 3H)
    bih = params["b_ih"].reshape(1, 3 * H).astype(f32)   # (1, 3H)
    bhh = params["b_hh"].reshape(1, 3 * H).astype(f32)   # (1, 3H)
    w3 = params["w3"].reshape(1, H).astype(f32)          # (1, H)    VPU operand
    b3 = params["b3"].reshape(1, 1).astype(f32)          # (1, 1) -> SMEM scalar
    return w1t, b1, wih_t, bih, whh_t, bhh, w3, b3


def _pick_block_b(B):
    """Batch tile: multiple of 8, <= ~256 rows, and >= 2 grid steps when B >= 16 so the
    'parallel' batch axis shards across both TensorCores on v7x.  (On v5e/v6e the extra
    grid step only costs ~0.35us.)  Ragged last tile is handled by Pallas block masking."""
    if B <= 8:
        return B
    n_tiles = max(2, pl.cdiv(B, 256))
    return _round_up(pl.cdiv(B, n_tiles), 8)


def critic_forward_sequence(inputs_seq, h0, params):
    """Fused rollout: inputs_seq (T, B, In) f32, h0 (B, H) f32 ->
       (v_seq (T, B, 1) f32, h_T (B, H) f32).  One pallas_call for all T steps."""
    T, B, In = inputs_seq.shape
    H = h0.shape[-1]
    w1t, b1, wih_t, bih, whh_t, bhh, w3, b3 = _prepare_params(params)

    block_b = _pick_block_b(B)
    nb = pl.cdiv(B, block_b)          # no wrapper-side padding; last tile may be ragged
    grid = (nb, T)

    def const(shape):
        # Full-array block with a constant index_map -> stays resident in VMEM.
        return pl.BlockSpec(shape, lambda b, t, _n=len(shape): (0,) * _n)

    v_seq, h_out = pl.pallas_call(
        _critic_seq_kernel,
        out_shape=(
            jax.ShapeDtypeStruct((T, B, 1), jnp.float32),   # v per step
            jax.ShapeDtypeStruct((B, H), jnp.float32),      # final hidden state
        ),
        grid=grid,
        in_specs=[
            pl.BlockSpec((1, block_b, In), lambda b, t: (t, b, 0)),   # x_t (tiled batch)
            pl.BlockSpec((block_b, H), lambda b, t: (b, 0)),          # h0  (tiled batch)
            const(w1t.shape), const(b1.shape),                        # fc1
            const(wih_t.shape), const(bih.shape),                     # GRU ih
            const(whh_t.shape), const(bhh.shape),                     # GRU hh
            const(w3.shape),                                          # fc3 row
            pl.BlockSpec((1, 1), lambda b, t: (0, 0),
                         memory_space=pltpu.MemorySpace.SMEM),         # fc3 bias scalar
        ],
        out_specs=(
            pl.BlockSpec((1, block_b, 1), lambda b, t: (t, b, 0)),     # v_t
            pl.BlockSpec((block_b, H), lambda b, t: (b, 0)),           # h carry / h_T
        ),
        compiler_params=pltpu.CompilerParams(
            dimension_semantics=("parallel", "arbitrary"),
            vmem_limit_bytes=32 * 1024 * 1024,
        ),
    )(inputs_seq, h0, w1t, b1, wih_t, bih, whh_t, bhh, w3, b3)
    return v_seq, h_out


def critic_forward(inputs, h_in, params):
    """Single-step forward matching Critic.forward: (B, In), (B, H) -> ((B, 1), (B, H))."""
    v_seq, h_out = critic_forward_sequence(inputs[None], h_in, params)
    return v_seq[0], h_out


def init_params(key, critic_input_dim, hidden_dim):
    """Deterministic synthetic init mirroring the PyTorch module's parameter shapes."""
    ks = jax.random.split(key, 8)
    H, In = hidden_dim, critic_input_dim
    s1 = 1.0 / jnp.sqrt(In)
    sg = 1.0 / jnp.sqrt(H)
    u = lambda k, shape, s: jax.random.uniform(k, shape, jnp.float32, -s, s)
    return {
        # fc1: Linear(In -> H)
        "w1": u(ks[0], (H, In), s1),
        "b1": u(ks[1], (H,), s1),
        # GRUCell(H -> H): weight_ih (3H, H), weight_hh (3H, H), biases (3H,)
        "w_ih": u(ks[2], (3 * H, H), sg),
        "b_ih": u(ks[3], (3 * H,), sg),
        "w_hh": u(ks[4], (3 * H, H), sg),
        "b_hh": u(ks[5], (3 * H,), sg),
        # fc3: Linear(H -> 1)
        "w3": u(ks[6], (1, H), sg),
        "b3": u(ks[7], (1,), sg),
    }


def critic_ref(inputs, h_in, p):
    """Pure-JAX f32 reference (PyTorch semantics) for correctness check."""
    y = jnp.maximum(inputs @ p["w1"].T + p["b1"], 0.0)
    gi = y @ p["w_ih"].T + p["b_ih"]
    gh = h_in @ p["w_hh"].T + p["b_hh"]
    H = h_in.shape[1]
    r = jax.nn.sigmoid(gi[:, :H] + gh[:, :H])
    z = jax.nn.sigmoid(gi[:, H:2 * H] + gh[:, H:2 * H])
    n = jnp.tanh(gi[:, 2 * H:] + r * gh[:, 2 * H:])
    h_out = (1.0 - z) * n + z * h_in
    v = h_out @ p["w3"].T + p["b3"]
    return v, h_out


if __name__ == "__main__":
    key = jax.random.PRNGKey(0)
    k_in, k_h, k_p, k_seq = jax.random.split(key, 4)

    batch = 8
    critic_input_dim = 48
    hidden_dim = 32
    seq_len = 8

    params = init_params(k_p, critic_input_dim, hidden_dim)

    # --- Single-step forward (the module's forward()) -----------------------------------
    inputs = jax.random.normal(k_in, (batch, critic_input_dim), jnp.float32)
    h_in = jax.random.normal(k_h, (batch, hidden_dim), jnp.float32)
    v, h_out = jax.jit(critic_forward)(inputs, h_in, params)
    jax.block_until_ready((v, h_out))

    v_ref, h_ref = critic_ref(inputs, h_in, params)
    assert v.shape == (batch, 1) and h_out.shape == (batch, hidden_dim)
    # bf16 MXU operands + approx-reciprocal sigmoid trade bit-parity for speed -> loose tol.
    assert jnp.allclose(v, v_ref, atol=5e-2, rtol=5e-2), float(jnp.max(jnp.abs(v - v_ref)))
    assert jnp.allclose(h_out, h_ref, atol=5e-2, rtol=5e-2), float(jnp.max(jnp.abs(h_out - h_ref)))

    # --- Fused rollout: T timesteps in one pallas_call, h carried in VMEM ----------------
    x_seq = jax.random.normal(k_seq, (seq_len, batch, critic_input_dim), jnp.float32)
    h0 = jnp.zeros((batch, hidden_dim), jnp.float32)
    v_seq, h_T = jax.jit(critic_forward_sequence)(x_seq, h0, params)
    jax.block_until_ready((v_seq, h_T))

    h_loop = h0
    v_steps = []
    for t in range(seq_len):
        v_t, h_loop = critic_ref(x_seq[t], h_loop, params)
        v_steps.append(v_t)
    v_seq_ref = jnp.stack(v_steps, axis=0)

    assert v_seq.shape == (seq_len, batch, 1) and h_T.shape == (batch, hidden_dim)
    assert jnp.allclose(v_seq, v_seq_ref, atol=5e-2, rtol=5e-2), \
        float(jnp.max(jnp.abs(v_seq - v_seq_ref)))
    assert jnp.allclose(h_T, h_loop, atol=5e-2, rtol=5e-2), \
        float(jnp.max(jnp.abs(h_T - h_loop)))

    print("KERNEL_OK")
</pallas_src>

<mosaic_0001>
module attributes {stable_mosaic.version = 11 : i64} {
  func.func @_critic_seq_kernel(%arg0: i32, %arg1: i32, %arg2: memref<1x8x48xf32, #tpu.memory_space<vmem>>, %arg3: memref<8x32xf32, #tpu.memory_space<vmem>>, %arg4: memref<48x32xbf16, #tpu.memory_space<vmem>>, %arg5: memref<1x32xf32, #tpu.memory_space<vmem>>, %arg6: memref<32x96xbf16, #tpu.memory_space<vmem>>, %arg7: memref<1x96xf32, #tpu.memory_space<vmem>>, %arg8: memref<32x96xbf16, #tpu.memory_space<vmem>>, %arg9: memref<1x96xf32, #tpu.memory_space<vmem>>, %arg10: memref<1x32xf32, #tpu.memory_space<vmem>>, %arg11: memref<1x1xf32, #tpu.memory_space<smem>>, %arg12: memref<1x8x1xf32, #tpu.memory_space<vmem>>, %arg13: memref<8x32xf32, #tpu.memory_space<vmem>>) attributes {dimension_semantics = [#tpu.dimension_semantics<parallel>, #tpu.dimension_semantics<arbitrary>], iteration_bounds = array<i64: 1, 1>, scalar_prefetch = 0 : i64, scratch_operands = 0 : i64, tpu.core_type = #tpu.core_type<tc>, window_params = [{transform_indices = @transform_0, window_bounds = array<i64: 1, 8, 48>}, {transform_indices = @transform_1, window_bounds = array<i64: 8, 32>}, {pipeline_mode = #tpu.pipeline_mode<synchronous>, transform_indices = @transform_2, window_bounds = array<i64: 48, 32>}, {pipeline_mode = #tpu.pipeline_mode<synchronous>, transform_indices = @transform_3, window_bounds = array<i64: 1, 32>}, {pipeline_mode = #tpu.pipeline_mode<synchronous>, transform_indices = @transform_4, window_bounds = array<i64: 32, 96>}, {pipeline_mode = #tpu.pipeline_mode<synchronous>, transform_indices = @transform_5, window_bounds = array<i64: 1, 96>}, {pipeline_mode = #tpu.pipeline_mode<synchronous>, transform_indices = @transform_6, window_bounds = array<i64: 32, 96>}, {pipeline_mode = #tpu.pipeline_mode<synchronous>, transform_indices = @transform_7, window_bounds = array<i64: 1, 96>}, {pipeline_mode = #tpu.pipeline_mode<synchronous>, transform_indices = @transform_8, window_bounds = array<i64: 1, 32>}, {transform_indices = @transform_9, window_bounds = array<i64: 1, 1>}, {transform_indices = @transform_10, window_bounds = array<i64: 1, 8, 1>}, {transform_indices = @transform_11, window_bounds = array<i64: 8, 32>}]} {
    %c0_i32 = arith.constant 0 : i32
    %0 = arith.cmpi eq, %arg1, %c0_i32 : i32
    %1 = arith.extui %0 : i1 to i32
    %c0_i32_0 = arith.constant 0 : i32
    %2 = arith.cmpi ne, %1, %c0_i32_0 : i32
    scf.if %2 {
      %c0_33 = arith.constant 0 : index
      %c0_34 = arith.constant 0 : index
      %59 = vector.load %arg3[%c0_33, %c0_34] : memref<8x32xf32, #tpu.memory_space<vmem>>, vector<8x32xf32>
      %c0_35 = arith.constant 0 : index
      %c0_36 = arith.constant 0 : index
      %60 = vector.load %arg13[%c0_35, %c0_36] : memref<8x32xf32, #tpu.memory_space<vmem>>, vector<8x32xf32>
      tpu.vector_store %arg13[%c0_35, %c0_36], %59 {strides = array<i32>} : memref<8x32xf32, #tpu.memory_space<vmem>>, vector<8x32xf32>,
    } else {
    }
    %c0 = arith.constant 0 : index
    %c0_1 = arith.constant 0 : index
    %3 = vector.load %arg13[%c0, %c0_1] : memref<8x32xf32, #tpu.memory_space<vmem>>, vector<8x32xf32>
    %c0_2 = arith.constant 0 : index
    %c0_3 = arith.constant 0 : index
    %c0_4 = arith.constant 0 : index
    %4 = vector.load %arg2[%c0_2, %c0_3, %c0_4] : memref<1x8x48xf32, #tpu.memory_space<vmem>>, vector<1x8x48xf32>
    %5 = vector.shape_cast %4 : vector<1x8x48xf32> to vector<8x48xf32>
    %6 = arith.truncf %5 : vector<8x48xf32> to vector<8x48xbf16>
    %c0_5 = arith.constant 0 : index
    %c0_6 = arith.constant 0 : index
    %7 = vector.load %arg4[%c0_5, %c0_6] : memref<48x32xbf16, #tpu.memory_space<vmem>>, vector<48x32xbf16>
    %cst = arith.constant dense<0.000000e+00> : vector<8x32xf32>
    %8 = tpu.matmul %6, %7, %cst {dimension_numbers = #tpu.dot_dimension_numbers<[1], [0], [0], [1], [0, 0, 1, 1], [], []>} : vector<8x48xbf16>, vector<48x32xbf16>, vector<8x32xf32> -> vector<8x32xf32>
    %c0_7 = arith.constant 0 : index
    %c0_8 = arith.constant 0 : index
    %9 = vector.load %arg5[%c0_7, %c0_8] : memref<1x32xf32, #tpu.memory_space<vmem>>, vector<1x32xf32>
    %10 = vector.broadcast %9 : vector<1x32xf32> to vector<8x32xf32>
    %11 = arith.addf %8, %10 : vector<8x32xf32>
    %cst_9 = arith.constant 0.000000e+00 : f32
    %12 = vector.broadcast %cst_9 : f32 to vector<8x32xf32>
    %13 = arith.maximumf %11, %12 : vector<8x32xf32>
    %14 = arith.truncf %13 : vector<8x32xf32> to vector<8x32xbf16>
    %c0_10 = arith.constant 0 : index
    %c0_11 = arith.constant 0 : index
    %15 = vector.load %arg6[%c0_10, %c0_11] : memref<32x96xbf16, #tpu.memory_space<vmem>>, vector<32x96xbf16>
    %cst_12 = arith.constant dense<0.000000e+00> : vector<8x96xf32>
    %16 = tpu.matmul %14, %15, %cst_12 {dimension_numbers = #tpu.dot_dimension_numbers<[1], [0], [0], [1], [0, 0, 1, 1], [], []>} : vector<8x32xbf16>, vector<32x96xbf16>, vector<8x96xf32> -> vector<8x96xf32>
    %c0_13 = arith.constant 0 : index
    %c0_14 = arith.constant 0 : index
    %17 = vector.load %arg7[%c0_13, %c0_14] : memref<1x96xf32, #tpu.memory_space<vmem>>, vector<1x96xf32>
    %18 = vector.broadcast %17 : vector<1x96xf32> to vector<8x96xf32>
    %19 = arith.addf %16, %18 : vector<8x96xf32>
    %20 = arith.truncf %3 : vector<8x32xf32> to vector<8x32xbf16>
    %c0_15 = arith.constant 0 : index
    %c0_16 = arith.constant 0 : index
    %21 = vector.load %arg8[%c0_15, %c0_16] : memref<32x96xbf16, #tpu.memory_space<vmem>>, vector<32x96xbf16>
    %cst_17 = arith.constant dense<0.000000e+00> : vector<8x96xf32>
    %22 = tpu.matmul %20, %21, %cst_17 {dimension_numbers = #tpu.dot_dimension_numbers<[1], [0], [0], [1], [0, 0, 1, 1], [], []>} : vector<8x32xbf16>, vector<32x96xbf16>, vector<8x96xf32> -> vector<8x96xf32>
    %c0_18 = arith.constant 0 : index
    %c0_19 = arith.constant 0 : index
    %23 = vector.load %arg9[%c0_18, %c0_19] : memref<1x96xf32, #tpu.memory_space<vmem>>, vector<1x96xf32>
    %24 = vector.broadcast %23 : vector<1x96xf32> to vector<8x96xf32>
    %25 = arith.addf %22, %24 : vector<8x96xf32>
    %26 = vector.extract_strided_slice %19 {offsets = [0, 0], sizes = [8, 64], strides = [1, 1]} : vector<8x96xf32> to vector<8x64xf32>
    %27 = vector.extract_strided_slice %25 {offsets = [0, 0], sizes = [8, 64], strides = [1, 1]} : vector<8x96xf32> to vector<8x64xf32>
    %28 = arith.addf %26, %27 : vector<8x64xf32>
    %cst_20 = arith.constant 0.000000e+00 : f32
    %29 = vector.broadcast %cst_20 : f32 to vector<8x64xf32>
    %30 = arith.subf %29, %28 : vector<8x64xf32>
    %31 = math.exp %30 : vector<8x64xf32>
    %cst_21 = arith.constant 1.000000e+00 : f32
    %32 = vector.broadcast %cst_21 : f32 to vector<8x64xf32>
    %33 = arith.addf %32, %31 : vector<8x64xf32>
    %34 = tpu.reciprocal %33 {approx = true} : vector<8x64xf32> -> vector<8x64xf32>
    %35 = vector.extract_strided_slice %34 {offsets = [0, 0], sizes = [8, 32], strides = [1, 1]} : vector<8x64xf32> to vector<8x32xf32>
    %36 = vector.extract_strided_slice %34 {offsets = [0, 32], sizes = [8, 32], strides = [1, 1]} : vector<8x64xf32> to vector<8x32xf32>
    %37 = vector.extract_strided_slice %19 {offsets = [0, 64], sizes = [8, 32], strides = [1, 1]} : vector<8x96xf32> to vector<8x32xf32>
    %38 = vector.extract_strided_slice %25 {offsets = [0, 64], sizes = [8, 32], strides = [1, 1]} : vector<8x96xf32> to vector<8x32xf32>
    %39 = arith.mulf %35, %38 : vector<8x32xf32>
    %40 = arith.addf %37, %39 : vector<8x32xf32>
    %41 = math.tanh %40 : vector<8x32xf32>
    %cst_22 = arith.constant 1.000000e+00 : f32
    %42 = vector.broadcast %cst_22 : f32 to vector<8x32xf32>
    %43 = arith.subf %42, %36 : vector<8x32xf32>
    %44 = arith.mulf %43, %41 : vector<8x32xf32>
    %45 = arith.mulf %36, %3 : vector<8x32xf32>
    %46 = arith.addf %44, %45 : vector<8x32xf32>
    %c0_23 = arith.constant 0 : index
    %c0_24 = arith.constant 0 : index
    %47 = vector.load %arg13[%c0_23, %c0_24] : memref<8x32xf32, #tpu.memory_space<vmem>>, vector<8x32xf32>
    tpu.vector_store %arg13[%c0_23, %c0_24], %46 {strides = array<i32>} : memref<8x32xf32, #tpu.memory_space<vmem>>, vector<8x32xf32>,
    %c0_25 = arith.constant 0 : index
    %c0_26 = arith.constant 0 : index
    %48 = vector.load %arg10[%c0_25, %c0_26] : memref<1x32xf32, #tpu.memory_space<vmem>>, vector<1x32xf32>
    %49 = vector.broadcast %48 : vector<1x32xf32> to vector<8x32xf32>
    %50 = arith.mulf %46, %49 : vector<8x32xf32>
    %cst_27 = arith.constant dense<0.000000e+00> : vector<8xf32>
    %51 = vector.multi_reduction <add>, %50, %cst_27 [1] : vector<8x32xf32> to vector<8xf32>
    %52 = vector.shape_cast %51 : vector<8xf32> to vector<8x1xf32>
    %c0_28 = arith.constant 0 : index
    %c0_29 = arith.constant 0 : index
    %53 = memref.load %arg11[%c0_28, %c0_29] : memref<1x1xf32, #tpu.memory_space<smem>>
    %54 = vector.broadcast %53 : f32 to vector<8x1xf32>
    %55 = arith.addf %52, %54 : vector<8x1xf32>
    %c0_30 = arith.constant 0 : index
    %c0_31 = arith.constant 0 : index
    %c0_32 = arith.constant 0 : index
    %56 = vector.load %arg12[%c0_30, %c0_31, %c0_32] : memref<1x8x1xf32, #tpu.memory_space<vmem>>, vector<1x8x1xf32>
    %57 = vector.shape_cast %56 : vector<1x8x1xf32> to vector<8x1xf32>
    %58 = vector.shape_cast %55 : vector<8x1xf32> to vector<1x8x1xf32>
    tpu.vector_store %arg12[%c0_30, %c0_31, %c0_32], %58 {strides = array<i32>} : memref<1x8x1xf32, #tpu.memory_space<vmem>>, vector<1x8x1xf32>,
    return
  }
  func.func @transform_0(%arg0: i32, %arg1: i32) -> (i32, i32, i32) {
    %c0_i32 = arith.constant 0 : i32
    %c0_i32_0 = arith.constant 0 : i32
    return %arg1, %arg0, %c0_i32 : i32, i32, i32
  }
  func.func @transform_1(%arg0: i32, %arg1: i32) -> (i32, i32) {
    %c0_i32 = arith.constant 0 : i32
    %c0_i32_0 = arith.constant 0 : i32
    return %arg0, %c0_i32 : i32, i32
  }
  func.func @transform_2(%arg0: i32, %arg1: i32) -> (i32, i32) {
    %c0_i32 = arith.constant 0 : i32
    %c0_i32_0 = arith.constant 0 : i32
    %c0_i32_1 = arith.constant 0 : i32
    return %c0_i32, %c0_i32_0 : i32, i32
  }
  func.func @transform_3(%arg0: i32, %arg1: i32) -> (i32, i32) {
    %c0_i32 = arith.constant 0 : i32
    %c0_i32_0 = arith.constant 0 : i32
    %c0_i32_1 = arith.constant 0 : i32
    return %c0_i32, %c0_i32_0 : i32, i32
  }
  func.func @transform_4(%arg0: i32, %arg1: i32) -> (i32, i32) {
    %c0_i32 = arith.constant 0 : i32
    %c0_i32_0 = arith.constant 0 : i32
    %c0_i32_1 = arith.constant 0 : i32
    return %c0_i32, %c0_i32_0 : i32, i32
  }
  func.func @transform_5(%arg0: i32, %arg1: i32) -> (i32, i32) {
    %c0_i32 = arith.constant 0 : i32
    %c0_i32_0 = arith.constant 0 : i32
    %c0_i32_1 = arith.constant 0 : i32
    return %c0_i32, %c0_i32_0 : i32, i32
  }
  func.func @transform_6(%arg0: i32, %arg1: i32) -> (i32, i32) {
    %c0_i32 = arith.constant 0 : i32
    %c0_i32_0 = arith.constant 0 : i32
    %c0_i32_1 = arith.constant 0 : i32
    return %c0_i32, %c0_i32_0 : i32, i32
  }
  func.func @transform_7(%arg0: i32, %arg1: i32) -> (i32, i32) {
    %c0_i32 = arith.constant 0 : i32
    %c0_i32_0 = arith.constant 0 : i32
    %c0_i32_1 = arith.constant 0 : i32
    return %c0_i32, %c0_i32_0 : i32, i32
  }
  func.func @transform_8(%arg0: i32, %arg1: i32) -> (i32, i32) {
    %c0_i32 = arith.constant 0 : i32
    %c0_i32_0 = arith.constant 0 : i32
    %c0_i32_1 = arith.constant 0 : i32
    return %c0_i32, %c0_i32_0 : i32, i32
  }
  func.func @transform_9(%arg0: i32, %arg1: i32) -> (i32, i32) {
    %c0_i32 = arith.constant 0 : i32
    %c0_i32_0 = arith.constant 0 : i32
    %c0_i32_1 = arith.constant 0 : i32
    return %c0_i32, %c0_i32_0 : i32, i32
  }
  func.func @transform_10(%arg0: i32, %arg1: i32) -> (i32, i32, i32) {
    %c0_i32 = arith.constant 0 : i32
    %c0_i32_0 = arith.constant 0 : i32
    return %arg1, %arg0, %c0_i32 : i32, i32, i32
  }
  func.func @transform_11(%arg0: i32, %arg1: i32) -> (i32, i32) {
    %c0_i32 = arith.constant 0 : i32
    %c0_i32_0 = arith.constant 0 : i32
    return %arg0, %c0_i32 : i32, i32
  }
}

</mosaic_0001>

<llo_original>
// kernel: critic_forward.1
$region0: #{critic_forward.1}
  #allocation0 [shape = 'u32[]', space=smem, size = 0x4, offset = 0x4, fixed_abs, tag = 'smem constant byte address 0x4 - core index']
  #allocation1 [shape = 'u32[144,128]{1,0:T(1,128)}', space=vmem, size = 0x12000, scoped, tag = 'internal scratch']
  #allocation2 [shape = 'f32[1,1]{1,0:T(1,128)S(6)}', space=smem, size = 0x200, scoped, tag = 'scoped memory for critic_forward.1']
  %s0 = inlined_call_operand.vmem [shape: f32[1,8,48], index: 0, kind: input, shape index: {}]
  %s1 = inlined_call_operand.vmem [shape: f32[8,32], index: 1, kind: input, shape index: {}]
  %s2 = inlined_call_operand.vmem [shape: bf16[48,32], index: 2, kind: input, shape index: {}]
  %s3 = inlined_call_operand.vmem [shape: f32[1,32], index: 3, kind: input, shape index: {}]
  %s4 = inlined_call_operand.vmem [shape: bf16[32,96], index: 4, kind: input, shape index: {}]
  %s5 = inlined_call_operand.vmem [shape: f32[1,96], index: 5, kind: input, shape index: {}]
  %s6 = inlined_call_operand.vmem [shape: bf16[32,96], index: 6, kind: input, shape index: {}]
  %s7 = inlined_call_operand.vmem [shape: f32[1,96], index: 7, kind: input, shape index: {}]
  %s8 = inlined_call_operand.vmem [shape: f32[1,32], index: 8, kind: input, shape index: {}]
  %s9 = inlined_call_operand.<no memory space> [shape: f32[1,1], index: 9, kind: input, shape index: {}]
  %s10 = inlined_call_operand.vmem [shape: f32[1,8,1], index: 10, kind: output, shape index: {0}]
  %s11 = inlined_call_operand.hbm [shape: f32[8,32], index: 11, kind: output, shape index: {1}]
  %12 = xla_tuple %s10, %s11
  %s13 = sld [smem:[#allocation0]]
  $region62: #{critic_forward.1} parent=0
    _
  %s15 = ssub.s32 1, %s13
  %s16 = scalar_select 0, %s15, %s13
  %17 = sst [smem:[#allocation2]] %s9
  $region1: #{critic_forward.1} parent=0
    #allocation3 [shape = 'u8[4096]{0}', space=vmem, size = 0x1000, scoped, tag = 'output window, operand 1, single buffered']
    #allocation4 [shape = 's32[1]{0}', space=sflag, size = 0x4, scoped, tag = 'scoped memory for critic_forward.1']
    %18 = vsyncpa [#allocation4], 0
    // Predicated region
    $region2: #{critic_forward.1} parent=1 // pred_check
      _
    $region3: #{critic_forward.1} parent=1 // pred_check_branch
      %20 = sbr.rel (0) target = $region5
    $region4: #{critic_forward.1} parent=1 // pred_region
      _
    $region5: #{critic_forward.1} parent=1 // pred_fallthru
      _
    // Predicated region
    $region6: #{critic_forward.1} parent=1 // pred_check
      _
    $region7: #{critic_forward.1} parent=1 // pred_check_branch
      %22 = sbr.rel (0) target = $region9
    $region8: #{critic_forward.1} parent=1 // pred_region
      _
    $region9: #{critic_forward.1} parent=1 // pred_fallthru
      _
    // Predicated region
    $region10: #{critic_forward.1} parent=1 // pred_check
      _
    $region11: #{critic_forward.1} parent=1 // pred_check_branch
      %24 = sbr.rel (0) target = $region13
    $region12: #{critic_forward.1} parent=1 // pred_region
      _
    $region13: #{critic_forward.1} parent=1 // pred_fallthru
      _
    // Predicated region
    $region14: #{critic_forward.1} parent=1 // pred_check
      _
    $region15: #{critic_forward.1} parent=1 // pred_check_branch
      %26 = sbr.rel (0) target = $region17
    $region16: #{critic_forward.1} parent=1 // pred_region
      _
    $region17: #{critic_forward.1} parent=1 // pred_fallthru
      _
    // Predicated region
    $region18: #{critic_forward.1} parent=1 // pred_check
      _
    $region19: #{critic_forward.1} parent=1 // pred_check_branch
      %28 = sbr.rel (0) target = $region21
    $region20: #{critic_forward.1} parent=1 // pred_region
      _
    $region21: #{critic_forward.1} parent=1 // pred_fallthru
      _
    // Predicated region
    $region22: #{critic_forward.1} parent=1 // pred_check
      _
    $region23: #{critic_forward.1} parent=1 // pred_check_branch
      %30 = sbr.rel (0) target = $region25
    $region24: #{critic_forward.1} parent=1 // pred_region
      _
    $region25: #{critic_forward.1} parent=1 // pred_fallthru
      _
    // Predicated region
    $region26: #{critic_forward.1} parent=1 // pred_check
      _
    $region27: #{critic_forward.1} parent=1 // pred_check_branch
      %32 = sbr.rel (0) target = $region29
    $region28: #{critic_forward.1} parent=1 // pred_region
      _
    $region29: #{critic_forward.1} parent=1 // pred_fallthru
      _
    // Predicated region
    $region30: #{critic_forward.1} parent=1 // pred_check
      _
    $region31: #{critic_forward.1} parent=1 // pred_check_branch
      %34 = sbr.rel (0) target = $region33
    $region32: #{critic_forward.1} parent=1 // pred_region
      _
    $region33: #{critic_forward.1} parent=1 // pred_fallthru
      _
    // Predicated region
    $region34: #{critic_forward.1} parent=1 // pred_check
      _
    $region35: #{critic_forward.1} parent=1 // pred_check_branch
      %36 = sbr.rel (0) target = $region37
    $region36: #{critic_forward.1} parent=1 // pred_region
      _
    $region37: #{critic_forward.1} parent=1 // pred_fallthru
      _
    // Predicated region
    $region38: #{critic_forward.1} parent=1 // pred_check
      _
    $region39: #{critic_forward.1} parent=1 // pred_check_branch
      %38 = sbr.rel (0) target = $region41
    $region40: #{critic_forward.1} parent=1 // pred_region
      _
    $region41: #{critic_forward.1} parent=1 // pred_fallthru
      _
    %p40 = scmp.eq.s32.totalorder 0, 0
    // Predicated region
    $region42: #{critic_forward.1} parent=1 // pred_check
      %p41 = pneg %p40
    $region43: #{critic_forward.1} parent=1 // pred_check_branch
      %43 = sbr.rel (%p41) target = $region45
    $region44: #{critic_forward.1} parent=1 // pred_region
      %v44 = vld [vmem:[%s1] sm:$0xff]
      %vm45 = vcmask 261120
      %46 = vst.msk [vmem:[#allocation3] sm:$0xff] %vm45, %v44
    $region45: #{critic_forward.1} parent=1 // pred_fallthru
      _
    %v47 = vld [vmem:[#allocation3] sm:$0xff]
    %v48 = vld [vmem:[%s0] sm:$0xff]
    %v49 = vpack.c.bf16 %v48, %v48
    %v50 = vld [vmem:[%s2] sm:$0xf]
    %v51 = vld [vmem:[%s2 + $0x4] sm:$0xf]
    %v52 = vld [vmem:[%s2 + $0x8] sm:$0xf]
    %v53 = vld [vmem:[%s2 + $0xc] sm:$0xf]
    %v54 = vld [vmem:[%s2 + $0x10] sm:$0xf]
    %v55 = vld [vmem:[%s2 + $0x14] sm:$0xf]
    %v56 = vld [vmem:[%s3] sm:$0x1]
    %v58 = vlaneseq
    %v59 = vshrl.u32 %v58, 7
    %v60 = vsub.s32 0, %v59
    %v61 = vrot.slane %v56, %v60
    %v69 = vunpack.c.l.b16 %v50
    %v70 = vunpack.c.l.b16 %v51
    %v71 = vunpack.c.l.b16 %v52
    %v72 = vunpack.c.l.b16 %v53
    %v73 = vunpack.c.l.b16 %v54
    %v74 = vunpack.c.l.b16 %v55
    %v75 = vpack.c.b16 %v70, %v69
    %v76 = vpack.c.b16 %v72, %v71
    %v77 = vpack.c.b16 %v74, %v73
    %vm81 = vcmask 392192
    %v83 = vsel %vm81, %v49, 0
    %85 = vmatprep.subr.bf16.mxu0 0
    %86 = vmatpush1.bf16.msra.mxu0 %v75
    %87 = vmatprep.subr.bf16.mxu0 0
    %88 = vmatpush1.bf16.msra.mxu0 %v76
    %89 = vmatprep.subr.bf16.mxu0 0
    %90 = vmatpush1.bf16.msra.mxu0 %v77
    %91 = vmatprep.subr.bf16.mxu0 0
    %92 = vmatpush1.bf16.msra.mxu0 0
    %93 = vmatprep.subr.bf16.mxu0 0
    %94 = vmatpush1.bf16.msra.mxu0 0
    %95 = vmatprep.subr.bf16.mxu0 0
    %96 = vmatpush1.bf16.msra.mxu0 0
    %97 = vmatprep.subr.bf16.mxu0 0
    %98 = vmatpush1.bf16.msra.mxu0 0
    %99 = vmatprep.subr.bf16.mxu0 0
    %100 = vmatpush1.bf16.msra.mxu0 0
    %101 = vmatprep.subr.bf16.mxu0 0
    %102 = vmatpush1.bf16.msra.mxu0 0
    %103 = vmatprep.subr.bf16.mxu0 0
    %104 = vmatpush1.bf16.msra.mxu0 0
    %105 = vmatprep.subr.bf16.mxu0 0
    %106 = vmatpush1.bf16.msra.mxu0 0
    %107 = vmatprep.subr.bf16.mxu0 0
    %108 = vmatpush1.bf16.msra.mxu0 0
    %109 = vmatprep.subr.bf16.mxu0 0
    %110 = vmatpush1.bf16.msra.mxu0 0
    %111 = vmatprep.subr.bf16.mxu0 0
    %112 = vmatpush1.bf16.msra.mxu0 0
    %113 = vmatprep.subr.bf16.mxu0 0
    %114 = vmatpush1.bf16.msra.mxu0 0
    %115 = vmatprep.subr.bf16.mxu0 0
    %116 = vmatpush1.bf16.msra.mxu0 0
    %117 = vmatprep.mubr.bf16.mxu0 0
    %118 = vmatmul.mubr.bf16.gmra.mrb[0].mxu0 %v83
    %v119 = vpop.f32.mrb[0].mxu0
    %v120 = vadd.f32 %v61, %v119
    %v121 = vpop.f32.mrb[0].mxu0
    %v122 = vpop.f32.mrb[0].mxu0
    %v123 = vpop.f32.mrb[0].mxu0
    %124 = vdwg.mxu0
    %v125 = vmax.f32 %v120, 0.0
    %v126 = vpack.c.bf16 %v125, %v125
    %v127 = vld [vmem:[%s4] sm:$0xf]
    %v128 = vld [vmem:[%s4 + $0x4] sm:$0xf]
    %v129 = vld [vmem:[%s4 + $0x8] sm:$0xf]
    %v130 = vld [vmem:[%s4 + $0xc] sm:$0xf]
    %v131 = vld [vmem:[%s5] sm:$0x1]
    %v133 = vlaneseq
    %v134 = vshrl.u32 %v133, 7
    %v135 = vsub.s32 0, %v134
    %v136 = vrot.slane %v131, %v135
    %v142 = vunpack.c.l.b16 %v127
    %v143 = vunpack.c.l.b16 %v128
    %v144 = vunpack.c.l.b16 %v129
    %v145 = vunpack.c.l.b16 %v130
    %v146 = vpack.c.b16 %v143, %v142
    %v147 = vpack.c.b16 %v145, %v144
    %vm150 = vcmask 261120
    %v152 = vsel %vm150, %v126, 0
    %154 = vmatprep.subr.bf16.mxu0 0
    %155 = vmatpush1.bf16.msra.mxu0 %v146
    %156 = vmatprep.subr.bf16.mxu0 0
    %157 = vmatpush1.bf16.msra.mxu0 %v147
    %158 = vmatprep.subr.bf16.mxu0 0
    %159 = vmatpush1.bf16.msra.mxu0 0
    %160 = vmatprep.subr.bf16.mxu0 0
    %161 = vmatpush1.bf16.msra.mxu0 0
    %162 = vmatprep.subr.bf16.mxu0 0
    %163 = vmatpush1.bf16.msra.mxu0 0
    %164 = vmatprep.subr.bf16.mxu0 0
    %165 = vmatpush1.bf16.msra.mxu0 0
    %166 = vmatprep.subr.bf16.mxu0 0
    %167 = vmatpush1.bf16.msra.mxu0 0
    %168 = vmatprep.subr.bf16.mxu0 0
    %169 = vmatpush1.bf16.msra.mxu0 0
    %170 = vmatprep.subr.bf16.mxu0 0
    %171 = vmatpush1.bf16.msra.mxu0 0
    %172 = vmatprep.subr.bf16.mxu0 0
    %173 = vmatpush1.bf16.msra.mxu0 0
    %174 = vmatprep.subr.bf16.mxu0 0
    %175 = vmatpush1.bf16.msra.mxu0 0
    %176 = vmatprep.subr.bf16.mxu0 0
    %177 = vmatpush1.bf16.msra.mxu0 0
    %178 = vmatprep.subr.bf16.mxu0 0
    %179 = vmatpush1.bf16.msra.mxu0 0
    %180 = vmatprep.subr.bf16.mxu0 0
    %181 = vmatpush1.bf16.msra.mxu0 0
    %182 = vmatprep.subr.bf16.mxu0 0
    %183 = vmatpush1.bf16.msra.mxu0 0
    %184 = vmatprep.subr.bf16.mxu0 0
    %185 = vmatpush1.bf16.msra.mxu0 0
    %186 = vmatprep.mubr.bf16.mxu0 0
    %187 = vmatmul.mubr.bf16.gmra.mrb[0].mxu0 %v152
    %v188 = vpop.f32.mrb[0].mxu0
    %v189 = vadd.f32 %v136, %v188
    %v190 = vpop.f32.mrb[0].mxu0
    %v191 = vpop.f32.mrb[0].mxu0
    %v192 = vpop.f32.mrb[0].mxu0
    %193 = vdwg.mxu0
    %v194 = vpack.c.bf16 %v47, %v47
    %v195 = vld [vmem:[%s6] sm:$0xf]
    %v196 = vld [vmem:[%s6 + $0x4] sm:$0xf]
    %v197 = vld [vmem:[%s6 + $0x8] sm:$0xf]
    %v198 = vld [vmem:[%s6 + $0xc] sm:$0xf]
    %v199 = vld [vmem:[%s7] sm:$0x1]
    %v201 = vlaneseq
    %v202 = vshrl.u32 %v201, 7
    %v203 = vsub.s32 0, %v202
    %v204 = vrot.slane %v199, %v203
    %v210 = vunpack.c.l.b16 %v195
    %v211 = vunpack.c.l.b16 %v196
    %v212 = vunpack.c.l.b16 %v197
    %v213 = vunpack.c.l.b16 %v198
    %v214 = vpack.c.b16 %v211, %v210
    %v215 = vpack.c.b16 %v213, %v212
    %v219 = vsel %vm150, %v194, 0
    %221 = vmatprep.subr.bf16.mxu0 0
    %222 = vmatpush1.bf16.msra.mxu0 %v214
    %223 = vmatprep.subr.bf16.mxu0 0
    %224 = vmatpush1.bf16.msra.mxu0 %v215
    %225 = vmatprep.subr.bf16.mxu0 0
    %226 = vmatpush1.bf16.msra.mxu0 0
    %227 = vmatprep.subr.bf16.mxu0 0
    %228 = vmatpush1.bf16.msra.mxu0 0
    %229 = vmatprep.subr.bf16.mxu0 0
    %230 = vmatpush1.bf16.msra.mxu0 0
    %231 = vmatprep.subr.bf16.mxu0 0
    %232 = vmatpush1.bf16.msra.mxu0 0
    %233 = vmatprep.subr.bf16.mxu0 0
    %234 = vmatpush1.bf16.msra.mxu0 0
    %235 = vmatprep.subr.bf16.mxu0 0
    %236 = vmatpush1.bf16.msra.mxu0 0
    %237 = vmatprep.subr.bf16.mxu0 0
    %238 = vmatpush1.bf16.msra.mxu0 0
    %239 = vmatprep.subr.bf16.mxu0 0
    %240 = vmatpush1.bf16.msra.mxu0 0
    %241 = vmatprep.subr.bf16.mxu0 0
    %242 = vmatpush1.bf16.msra.mxu0 0
    %243 = vmatprep.subr.bf16.mxu0 0
    %244 = vmatpush1.bf16.msra.mxu0 0
    %245 = vmatprep.subr.bf16.mxu0 0
    %246 = vmatpush1.bf16.msra.mxu0 0
    %247 = vmatprep.subr.bf16.mxu0 0
    %248 = vmatpush1.bf16.msra.mxu0 0
    %249 = vmatprep.subr.bf16.mxu0 0
    %250 = vmatpush1.bf16.msra.mxu0 0
    %251 = vmatprep.subr.bf16.mxu0 0
    %252 = vmatpush1.bf16.msra.mxu0 0
    %253 = vmatprep.mubr.bf16.mxu0 0
    %254 = vmatmul.mubr.bf16.gmra.mrb[0].mxu0 %v219
    %v255 = vpop.f32.mrb[0].mxu0
    %v256 = vadd.f32 %v204, %v255
    %v257 = vpop.f32.mrb[0].mxu0
    %v258 = vpop.f32.mrb[0].mxu0
    %v259 = vpop.f32.mrb[0].mxu0
    %260 = vdwg.mxu0
    %v261 = vadd.f32 %v189, %v256
    %v262 = vsub.f32 0.0, %v261
    %v263 = vmul.f32 %v262, 1.442695
    %v264 = vpow.pop %v263
    %v265 = vadd.f32 %v264, 1.0
    %v266 = vrcp.pop %v265
    %268 = vrot.lane.b32.xlu0 %v256, 64
    %v269 = vpop.permute.xlu0 %268
    %v271 = vmul.f32 %v266, %v269
    %273 = vrot.lane.b32.xlu0 %v271, 64
    %v274 = vpop.permute.xlu0 %273
    %v276 = vadd.f32 %v189, %v274
    %v277 = vtanh.pop %v276
    %v278 = vsub.f32 1.0, %v266
    %280 = vrot.lane.b32.xlu0 %v277, 96
    %v281 = vpop.permute.xlu0 %280
    %v283 = vmul.f32 %v278, %v281
    %285 = vrot.lane.b32.xlu0 %v47, 32
    %v286 = vpop.permute.xlu0 %285
    %v288 = vmul.f32 %v266, %v286
    %v289 = vadd.f32 %v283, %v288
    %291 = vrot.lane.b32.xlu0 %v289, 96
    %v292 = vpop.permute.xlu0 %291
    %294 = vst.msk [vmem:[#allocation3] sm:$0xff] %vm150, %v292
    %v295 = vld [vmem:[%s8] sm:$0x1]
    %v297 = vlaneseq
    %v298 = vshrl.u32 %v297, 7
    %v299 = vsub.s32 0, %v298
    %v300 = vrot.slane %v295, %v299
    %301 = vrot.lane.b32.xlu0 %v300, 32
    %v302 = vpop.permute.xlu0 %301
    %v304 = vmul.f32 %v289, %v302
    %306 = vrot.lane.b32.xlu0 %v304, 96
    %v307 = vpop.permute.xlu0 %306
    %v309 = vsel %vm150, %v307, 0.0
    %310 = vadd.xlane.f32.xlu0 %v309
    %v311 = vpop.xlane.xlu0 %310
    %s312 = sld [smem:[#allocation2]]
    %v313 = vstv %s312
    %v314 = vadd.f32 %v311, %v313
    %vm315 = vcmask 7168
    %316 = vst.msk [vmem:[%s10] sm:$0xff] %vm315, %v314
    // Predicated region
    $region46: #{critic_forward.1} parent=1 // pred_check
      _
    $region47: #{critic_forward.1} parent=1 // pred_check_branch
      %318 = sbr.rel (0) target = $region49
    $region48: #{critic_forward.1} parent=1 // pred_region
      _
    $region49: #{critic_forward.1} parent=1 // pred_fallthru
      _
    // Predicated region
    $region50: #{critic_forward.1} parent=1 // pred_check
      _
    $region51: #{critic_forward.1} parent=1 // pred_check_branch
      %320 = sbr.rel (0) target = $region53
    $region52: #{critic_forward.1} parent=1 // pred_region
      %s322 = ssub.s32 128, 128
      %323 = vsyncadd [#allocation4], %s322
      %s325 = sshll.u32 [#allocation3], 4
      %s326 = int_to_ptr.vmem [resolvable:$true] %s325
      %328 = dma.vmem_to_hbm [thread:$0]  %s326, 128, %s11, [#allocation4]
    $region53: #{critic_forward.1} parent=1 // pred_fallthru
      _
    // Predicated region
    $region54: #{critic_forward.1} parent=1 // pred_check
      _
    $region55: #{critic_forward.1} parent=1 // pred_check_branch
      %330 = sbr.rel (0) target = $region57
    $region56: #{critic_forward.1} parent=1 // pred_region
      _
    $region57: #{critic_forward.1} parent=1 // pred_fallthru
      _
    // Predicated region
    $region58: #{critic_forward.1} parent=1 // pred_check
      _
    $region59: #{critic_forward.1} parent=1 // pred_check_branch
      %332 = sbr.rel (0) target = $region61
    $region60: #{critic_forward.1} parent=1 // pred_region
      %333 = dma.done [#allocation4], 128
    $region61: #{critic_forward.1} parent=1 // pred_fallthru
      _
    %334 = vsyncpa [#allocation4], 1

</llo_original>
